<compile_context>
chip_gen: v5e
topology: v5e:2x2
jax: 0.10.0
libtpu: 0.0.40
codegen_flags: <defaults>
</compile_context>

<pallas_src>
import functools

import jax
import jax.numpy as jnp
from jax import lax
from jax.experimental import pallas as pl
from jax.experimental.pallas import tpu as pltpu

MAX_NORM = 3.0
EPS = 1e-7                      # torch's renorm divisor epsilon (reference only)
_N_INFLIGHT = 8                 # rolling in-flight row DMAs in the gather kernel
_MATMUL_TABLE_BYTES_LIMIT = 4 * 1024 * 1024   # above this, use the DMA gather path


# ----------------------------------------------------------------------------
# helpers
# ----------------------------------------------------------------------------
def _round_up(x, m):
    return (x + m - 1) // m * m


def _cdiv(a, b):
    return (a + b - 1) // b


def _vmem_capacity_bytes():
    try:
        info = pltpu.get_tpu_info()
        for attr in ("vmem_capacity_bytes", "vmem_size_bytes", "vmem_bytes"):
            cap = getattr(info, attr, None)
            if cap:
                return int(cap)
    except Exception:
        pass
    return 64 * 1024 * 1024     # conservative default = v7x per-TensorCore VMEM


def _vmem_limit_bytes():
    # leave headroom for Mosaic-internal scratch: ~48 MiB on v7x, ~96 MiB on v5e/v6e
    return int(min(_vmem_capacity_bytes() * 3 // 4, 100 * 1024 * 1024))


def _choose_tile(n_rows, max_tile):
    tile = min(max_tile, _round_up(n_rows, 8))
    if n_rows > 8:
        # ensure >= 2 grid steps so both v7x TensorCores get work ("parallel" axis)
        tile = min(tile, _round_up(_cdiv(n_rows, 2), 8))
    return max(8, tile)


def _cap_matmul_tile(tile, v_pad, d, vmem_budget):
    # keep onehot(T,Vp) bf16 + 2x out(T,D) f32 + (worst case 2x) planes under budget
    planes_bytes = 2 * 3 * v_pad * d * 2
    per_row = v_pad * 2 + 2 * d * 4 + 2 * 4
    avail = vmem_budget - planes_bytes
    if avail <= per_row * 8:
        return 8
    return max(8, min(tile, (avail // per_row) // 8 * 8))


def _resident_block_spec(block_shape, index_map):
    """Constant-index resident block: single-buffer it (no re-DMA is ever needed)."""
    try:
        return pl.BlockSpec(block_shape, index_map, pipeline_mode=pl.Buffered(1))
    except TypeError:  # older jax without pipeline_mode: fall back to default buffering
        return pl.BlockSpec(block_shape, index_map)


def _renorm(rows):
    # max_norm=3.0: scale = 3/||row|| when ||row|| > 3 else 1.  Uses rsqrt (EUP
    # slot); differs from torch's 3/(norm+1e-7) by ~3e-8 relative (intentional).
    sumsq = jnp.sum(rows * rows, axis=-1, keepdims=True)
    scale = jnp.where(sumsq > MAX_NORM * MAX_NORM, MAX_NORM * lax.rsqrt(sumsq), 1.0)
    return rows * scale


# ----------------------------------------------------------------------------
# Path A: small vocab -> one-hot MXU gather over bf16 hi/mid/lo planes
# ----------------------------------------------------------------------------
def _onehot_kernel(idx_ref, planes_ref, out_ref):
    # idx_ref:    VMEM (T, 1)      int32  -- this tile's flat indices
    # planes_ref: VMEM (3, Vp, D)  bf16   -- hi/mid/lo planes of the f32 table
    # out_ref:    VMEM (T, D)      f32
    T = out_ref.shape[0]
    Vp = planes_ref.shape[1]

    idx_col = idx_ref[...]                                   # (T, 1)
    iota_v = lax.broadcasted_iota(jnp.int32, (T, Vp), 1)     # (T, Vp)
    onehot = (idx_col == iota_v).astype(jnp.bfloat16)        # exact 0/1 in bf16

    # Three DEFAULT-precision bf16 MXU passes; exact selection of each plane,
    # f32 accumulation reconstructs the original f32 rows.
    rows = (
        jnp.dot(onehot, planes_ref[0], preferred_element_type=jnp.float32)
        + jnp.dot(onehot, planes_ref[1], preferred_element_type=jnp.float32)
        + jnp.dot(onehot, planes_ref[2], preferred_element_type=jnp.float32)
    )
    out_ref[...] = _renorm(rows)


def _make_bf16_planes(table_f32, vocab_pad=128):
    """One-time prep of the frozen table: zero-pad vocab to a multiple of 128
    (v5e MXU native; also satisfies lane width) and split f32 -> 3 bf16 planes."""
    V, D = table_f32.shape
    Vp = _round_up(V, vocab_pad)
    tab = jnp.pad(table_f32, ((0, Vp - V), (0, 0)))
    hi = tab.astype(jnp.bfloat16)
    r1 = tab - hi.astype(jnp.float32)
    mid = r1.astype(jnp.bfloat16)
    lo = (r1 - mid.astype(jnp.float32)).astype(jnp.bfloat16)
    return jnp.stack([hi, mid, lo])                          # (3, Vp, D) bf16


def _forward_onehot(nouns_idx, planes, *, max_tile):
    B, S = nouns_idx.shape
    _, Vp, D = planes.shape
    N = B * S

    tile = _choose_tile(N, max_tile)
    tile = _cap_matmul_tile(tile, Vp, D, _vmem_limit_bytes())
    N_pad = _round_up(N, tile)

    flat = nouns_idx.reshape(N).astype(jnp.int32)
    idx = jnp.zeros((N_pad, 1), jnp.int32).at[:N, 0].set(flat)

    out = pl.pallas_call(
        _onehot_kernel,
        out_shape=jax.ShapeDtypeStruct((N_pad, D), jnp.float32),
        grid_spec=pltpu.PrefetchScalarGridSpec(
            num_scalar_prefetch=0,
            grid=(N_pad // tile,),
            in_specs=[
                pl.BlockSpec((tile, 1), lambda i: (i, 0)),              # indices tile
                _resident_block_spec((3, Vp, D), lambda i: (0, 0, 0)),  # resident planes
            ],
            out_specs=pl.BlockSpec((tile, D), lambda i: (i, 0)),
        ),
        compiler_params=pltpu.CompilerParams(
            dimension_semantics=("parallel",),       # independent tiles -> 2 TCs on v7x
            vmem_limit_bytes=_vmem_limit_bytes(),
        ),
    )(idx, planes)

    return out[:N].reshape(B, S, D)


# ----------------------------------------------------------------------------
# Path B: realistic / large vocab -> DMA row-gather (table stays in HBM)
# ----------------------------------------------------------------------------
def _gather_kernel(idx_ref, table_ref, out_ref, rows_ref, sems, *, tile):
    # idx_ref:   SMEM (N_pad,) int32    -- scalar-prefetched flat indices
    # table_ref: HBM  (V, D)   f32      -- full table, never resident in VMEM
    # out_ref:   VMEM (tile, D) f32
    # rows_ref:  VMEM (tile, D) f32 scratch
    # sems:      DMA semaphores (_N_INFLIGHT,)
    base = pl.program_id(0) * tile

    def _copy(r):
        row = idx_ref[base + r]
        return pltpu.make_async_copy(
            table_ref.at[pl.ds(row, 1), :],
            rows_ref.at[pl.ds(r, 1), :],
            sems.at[r & (_N_INFLIGHT - 1)],
        )

    n_prime = min(_N_INFLIGHT, tile)

    @pl.loop(0, n_prime)
    def _(r):
        _copy(r).start()

    @pl.loop(0, tile)
    def _(r):
        _copy(r).wait()

        @pl.when(r + _N_INFLIGHT < tile)
        def _():
            _copy(r + _N_INFLIGHT).start()

    out_ref[...] = _renorm(rows_ref[...])


def _forward_gather(nouns_idx, table, *, max_tile):
    B, S = nouns_idx.shape
    V, D = table.shape
    N = B * S

    tile = _choose_tile(N, max_tile)
    N_pad = _round_up(N, tile)

    flat = nouns_idx.reshape(N).astype(jnp.int32)
    idx = jnp.zeros((N_pad,), jnp.int32).at[:N].set(flat)    # pad rows gather row 0

    kernel = functools.partial(_gather_kernel, tile=tile)
    out = pl.pallas_call(
        kernel,
        out_shape=jax.ShapeDtypeStruct((N_pad, D), jnp.float32),
        grid_spec=pltpu.PrefetchScalarGridSpec(
            num_scalar_prefetch=1,                           # indices -> SMEM
            grid=(N_pad // tile,),
            in_specs=[pl.BlockSpec(memory_space=pl.ANY)],    # table stays in HBM
            out_specs=pl.BlockSpec((tile, D), lambda i, idx_ref: (i, 0)),
            scratch_shapes=[
                pltpu.VMEM((tile, D), jnp.float32),
                pltpu.SemaphoreType.DMA((_N_INFLIGHT,)),
            ],
        ),
        compiler_params=pltpu.CompilerParams(
            dimension_semantics=("parallel",),
            vmem_limit_bytes=_vmem_limit_bytes(),
        ),
    )(idx, table)

    return out[:N].reshape(B, S, D)


# ----------------------------------------------------------------------------
# Module-like constructor: one-time table prep (frozen), returns the forward fn
# ----------------------------------------------------------------------------
def make_visual_encoder(imagenet_embeddings, *, max_tile=512, use_gather=None):
    """Build the VisualEncoder forward: nouns_idx (B, S) int -> (B, S, D) f32."""
    table = imagenet_embeddings
    if table.dtype != jnp.float32:
        table = table.astype(jnp.float32)
    V, D = table.shape

    if use_gather is None:
        use_gather = (V * D * 4) > _MATMUL_TABLE_BYTES_LIMIT

    if use_gather:
        table_arg = table                                    # raw f32, lives in HBM
        jitted = jax.jit(functools.partial(_forward_gather, max_tile=max_tile))
    else:
        table_arg = _make_bf16_planes(table)                 # one-time pad + plane split
        jitted = jax.jit(functools.partial(_forward_onehot, max_tile=max_tile))

    return lambda nouns_idx: jitted(nouns_idx, table_arg)


def _reference(nouns_idx, table):
    rows = table[nouns_idx]                                  # (B, S, D)
    norm = jnp.sqrt(jnp.sum(rows * rows, axis=-1, keepdims=True))
    scale = jnp.where(norm > MAX_NORM, MAX_NORM / (norm + EPS), 1.0)
    return rows * scale


if __name__ == "__main__":
    key = jax.random.PRNGKey(0)
    k_tab, k_idx = jax.random.split(key)

    V, D = 32, 128     # config.imagenet_embeddings shape (vocab, embed_dim)
    B, S = 2, 8        # batch of noun-index sequences

    # Deterministic "pretrained" table, scaled so some rows have norm > 3 and
    # some < 3 (exercises both renorm branches).
    imagenet_embeddings = 0.27 * jax.random.normal(k_tab, (V, D), dtype=jnp.float32)
    nouns_idx = jax.random.randint(k_idx, (B, S), 0, V, dtype=jnp.int32)

    ref = _reference(nouns_idx, imagenet_embeddings)

    # Path A: small-vocab one-hot/MXU path (auto-selected for this table size).
    encoder = make_visual_encoder(imagenet_embeddings)
    out = jax.block_until_ready(encoder(nouns_idx))
    assert out.shape == (B, S, D) and out.dtype == jnp.float32
    assert jnp.allclose(out, ref, rtol=1e-5, atol=1e-5), "one-hot path mismatch"

    # Path B: DMA row-gather path (what ImageNet-scale vocabularies use).
    encoder_gather = make_visual_encoder(imagenet_embeddings, use_gather=True)
    out_g = jax.block_until_ready(encoder_gather(nouns_idx))
    assert out_g.shape == (B, S, D) and out_g.dtype == jnp.float32
    assert jnp.allclose(out_g, ref, rtol=1e-5, atol=1e-5), "gather path mismatch"

    print("KERNEL_OK")
</pallas_src>

<mosaic_0001>
module attributes {stable_mosaic.version = 11 : i64} {
  func.func @_onehot_kernel(%arg0: i32, %arg1: memref<8x1xi32, #tpu.memory_space<vmem>>, %arg2: memref<3x128x128xbf16, #tpu.memory_space<vmem>>, %arg3: memref<8x128xf32, #tpu.memory_space<vmem>>) attributes {dimension_semantics = [#tpu.dimension_semantics<parallel>], iteration_bounds = array<i64: 2>, scalar_prefetch = 0 : i64, scratch_operands = 0 : i64, tpu.core_type = #tpu.core_type<tc>, window_params = [{transform_indices = @transform_0, window_bounds = array<i64: 8, 1>}, {pipeline_mode = #tpu.pipeline_mode<synchronous>, transform_indices = @transform_1, window_bounds = array<i64: 3, 128, 128>}, {transform_indices = @transform_2, window_bounds = array<i64: 8, 128>}]} {
    %c0 = arith.constant 0 : index
    %c0_0 = arith.constant 0 : index
    %0 = vector.load %arg1[%c0, %c0_0] : memref<8x1xi32, #tpu.memory_space<vmem>>, vector<8x1xi32>
    %1 = tpu.iota {dimensions = array<i32: 1>} : vector<8x128xi32>
    %2 = vector.broadcast %0 : vector<8x1xi32> to vector<8x128xi32>
    %3 = arith.cmpi eq, %2, %1 : vector<8x128xi32>
    %4 = arith.extui %3 : vector<8x128xi1> to vector<8x128xi32>
    %5 = arith.sitofp %4 : vector<8x128xi32> to vector<8x128xf32>
    %6 = arith.truncf %5 : vector<8x128xf32> to vector<8x128xbf16>
    %c0_1 = arith.constant 0 : index
    %c0_2 = arith.constant 0 : index
    %c0_3 = arith.constant 0 : index
    %7 = vector.load %arg2[%c0_1, %c0_2, %c0_3] : memref<3x128x128xbf16, #tpu.memory_space<vmem>>, vector<1x128x128xbf16>
    %8 = vector.shape_cast %7 : vector<1x128x128xbf16> to vector<128x128xbf16>
    %cst = arith.constant dense<0.000000e+00> : vector<8x128xf32>
    %9 = tpu.matmul %6, %8, %cst {dimension_numbers = #tpu.dot_dimension_numbers<[1], [0], [0], [1], [0, 0, 1, 1], [], []>} : vector<8x128xbf16>, vector<128x128xbf16>, vector<8x128xf32> -> vector<8x128xf32>
    %c1 = arith.constant 1 : index
    %c0_4 = arith.constant 0 : index
    %c0_5 = arith.constant 0 : index
    %10 = vector.load %arg2[%c1, %c0_4, %c0_5] : memref<3x128x128xbf16, #tpu.memory_space<vmem>>, vector<1x128x128xbf16>
    %11 = vector.shape_cast %10 : vector<1x128x128xbf16> to vector<128x128xbf16>
    %cst_6 = arith.constant dense<0.000000e+00> : vector<8x128xf32>
    %12 = tpu.matmul %6, %11, %cst_6 {dimension_numbers = #tpu.dot_dimension_numbers<[1], [0], [0], [1], [0, 0, 1, 1], [], []>} : vector<8x128xbf16>, vector<128x128xbf16>, vector<8x128xf32> -> vector<8x128xf32>
    %13 = arith.addf %9, %12 : vector<8x128xf32>
    %c2 = arith.constant 2 : index
    %c0_7 = arith.constant 0 : index
    %c0_8 = arith.constant 0 : index
    %14 = vector.load %arg2[%c2, %c0_7, %c0_8] : memref<3x128x128xbf16, #tpu.memory_space<vmem>>, vector<1x128x128xbf16>
    %15 = vector.shape_cast %14 : vector<1x128x128xbf16> to vector<128x128xbf16>
    %cst_9 = arith.constant dense<0.000000e+00> : vector<8x128xf32>
    %16 = tpu.matmul %6, %15, %cst_9 {dimension_numbers = #tpu.dot_dimension_numbers<[1], [0], [0], [1], [0, 0, 1, 1], [], []>} : vector<8x128xbf16>, vector<128x128xbf16>, vector<8x128xf32> -> vector<8x128xf32>
    %17 = arith.addf %13, %16 : vector<8x128xf32>
    %18 = arith.mulf %17, %17 : vector<8x128xf32>
    %cst_10 = arith.constant dense<0.000000e+00> : vector<8xf32>
    %19 = vector.multi_reduction <add>, %18, %cst_10 [1] : vector<8x128xf32> to vector<8xf32>
    %20 = vector.shape_cast %19 : vector<8xf32> to vector<8x1xf32>
    %cst_11 = arith.constant 9.000000e+00 : f32
    %21 = vector.broadcast %cst_11 : f32 to vector<8x1xf32>
    %22 = arith.cmpf ogt, %20, %21 : vector<8x1xf32>
    %23 = math.rsqrt %20 : vector<8x1xf32>
    %cst_12 = arith.constant 3.000000e+00 : f32
    %24 = vector.broadcast %cst_12 : f32 to vector<8x1xf32>
    %25 = arith.mulf %24, %23 : vector<8x1xf32>
    %cst_13 = arith.constant 1.000000e+00 : f32
    %26 = vector.broadcast %cst_13 : f32 to vector<8x1xf32>
    %27 = arith.select %22, %25, %26 : vector<8x1xi1>, vector<8x1xf32>
    %28 = vector.broadcast %27 : vector<8x1xf32> to vector<8x128xf32>
    %29 = arith.mulf %17, %28 : vector<8x128xf32>
    %c0_14 = arith.constant 0 : index
    %c0_15 = arith.constant 0 : index
    %30 = vector.load %arg3[%c0_14, %c0_15] : memref<8x128xf32, #tpu.memory_space<vmem>>, vector<8x128xf32>
    tpu.vector_store %arg3[%c0_14, %c0_15], %29 {strides = array<i32>} : memref<8x128xf32, #tpu.memory_space<vmem>>, vector<8x128xf32>,
    return
  }
  func.func @transform_0(%arg0: i32) -> (i32, i32) {
    %c0_i32 = arith.constant 0 : i32
    %c0_i32_0 = arith.constant 0 : i32
    return %arg0, %c0_i32 : i32, i32
  }
  func.func @transform_1(%arg0: i32) -> (i32, i32, i32) {
    %c0_i32 = arith.constant 0 : i32
    %c0_i32_0 = arith.constant 0 : i32
    %c0_i32_1 = arith.constant 0 : i32
    %c0_i32_2 = arith.constant 0 : i32
    return %c0_i32, %c0_i32_0, %c0_i32_1 : i32, i32, i32
  }
  func.func @transform_2(%arg0: i32) -> (i32, i32) {
    %c0_i32 = arith.constant 0 : i32
    %c0_i32_0 = arith.constant 0 : i32
    return %arg0, %c0_i32 : i32, i32
  }
}

</mosaic_0001>

<llo_original>
// kernel: _forward_onehot.1
$region0: #{_forward_onehot.1}
  #allocation0 [shape = 'u32[]', space=smem, size = 0x4, offset = 0x4, fixed_abs, tag = 'smem constant byte address 0x4 - core index']
  #allocation1 [shape = 'u32[72,128]{1,0:T(1,128)}', space=vmem, size = 0x9000, scoped, tag = 'internal scratch']
  %s0 = inlined_call_operand.vmem [shape: s32[16,1], index: 0, kind: input, shape index: {}]
  %s1 = inlined_call_operand.hbm [shape: bf16[3,128,128], index: 1, kind: input, shape index: {}]
  %s2 = inlined_call_operand.hbm [shape: f32[16,128], index: 2, kind: output, shape index: {}]
  %s3 = sld [smem:[#allocation0]]
  $region45: #{_forward_onehot.1} parent=0
    _
  %s5 = ssub.s32 1, %s3
  %s6 = scalar_select 0, %s5, %s3
  $region1: #{_forward_onehot.1} parent=0
    #allocation2 [shape = 'u8[98304]{0}', space=vmem, size = 0x18000, scoped, tag = 'input window, operand 1, single buffered']
    #allocation3 [shape = 's32[2]{0}', space=sflag, size = 0x8, scoped, tag = 'scoped memory for _forward_onehot.1']
    #allocation4 [shape = 's32[2]{0}', space=sflag, size = 0x8, scoped, tag = 'scoped memory for _forward_onehot.1']
    #allocation5 [shape = 'u8[8192]{0}', space=vmem, size = 0x2000, scoped, tag = 'output window, operand 0']
    %7 = vsyncpa [#allocation3], 0
    %8 = vsyncpa [#allocation4], 0
    %s9 = scalar_lea.sflag [#allocation4], 1
    %10 = vsyncpa %s9, 0
    loop: start=0, step=1, limit=4
    $region2: #{_forward_onehot.1} parent=1 // loop_pre_header
      _
    $region3: #{_forward_onehot.1} parent=1 // loop_header
      %s12 = sphi 0, %s16
      %p13 = scmp.ge.s32.totalorder %s12, 4
      %s22 = sphi 0, %s24
      %s25 = sphi 0, %s22
      %s26 = sphi 0, %s25
      %s42 = sphi 0, %s26
      %s46 = sphi 0, %s46
      %s48 = sphi 0, %s46
      %s49 = sphi 0, %s48
      %s63 = sphi 0, %s49
      %s69 = sphi 0, %s71
      %s72 = sphi 0, %s69
      %s73 = sphi 0, %s72
      %s89 = sphi 0, %s73
    $region4: #{_forward_onehot.1} parent=1 // loop_header_branch
      %15 = sbr.rel (%p13) target = $region8
    $region5: #{_forward_onehot.1} parent=1 // loop_body
      %s17 = ssub.s32 %s12, 1
      %s18 = ssub.s32 %s12, 2
      %s19 = sadd.s32 %s12, 1
      %s20 = ssub.s32 %s12, %s19
      %p21 = scmp.eq.s32.totalorder %s20, 0
      %s23 = sadd.s32 %s22, 1
      %s24 = scalar_select %p21, %s22, %s23
      %p27 = pneg %p21
      %p28 = scmp.eq.s32.totalorder %s12, 1
      %p29 = por %p27, %p28
      %p30 = scmp.ne.s32.totalorder %s22, %s25
      %p31 = scmp.eq.s32.totalorder %s12, 0
      %p32 = por %p30, %p31
      %p33 = scmp.ne.s32.totalorder %s22, %s25
      %p34 = scmp.eq.s32.totalorder %s17, 1
      %p35 = por %p33, %p34
      %p36 = scmp.ne.s32.totalorder %s25, %s26
      %p37 = scmp.eq.s32.totalorder %s17, 0
      %p38 = por %p36, %p37
      %p39 = scmp.ne.s32.totalorder %s25, %s26
      %p40 = scmp.eq.s32.totalorder %s18, 1
      %p41 = por %p39, %p40
      %p43 = scmp.ne.s32.totalorder %s26, %s42
      %p44 = scmp.eq.s32.totalorder %s18, 0
      %p45 = por %p43, %p44
      %s47 = sadd.s32 %s46, 1
      %p50 = scmp.eq.s32.totalorder %s12, 1
      %p51 = scmp.ne.s32.totalorder %s46, %s48
      %p52 = scmp.eq.s32.totalorder %s12, 0
      %p53 = por %p51, %p52
      %p54 = scmp.ne.s32.totalorder %s46, %s48
      %p55 = scmp.eq.s32.totalorder %s17, 1
      %p56 = por %p54, %p55
      %p57 = scmp.ne.s32.totalorder %s48, %s49
      %p58 = scmp.eq.s32.totalorder %s17, 0
      %p59 = por %p57, %p58
      %p60 = scmp.ne.s32.totalorder %s48, %s49
      %p61 = scmp.eq.s32.totalorder %s18, 1
      %p62 = por %p60, %p61
      %p64 = scmp.ne.s32.totalorder %s49, %s63
      %p65 = scmp.eq.s32.totalorder %s18, 0
      %p66 = por %p64, %p65
      %s67 = ssub.s32 %s12, %s19
      %p68 = scmp.eq.s32.totalorder %s67, 0
      %s70 = sadd.s32 %s69, 1
      %s71 = scalar_select %p68, %s69, %s70
      %p74 = pneg %p68
      %p75 = scmp.eq.s32.totalorder %s12, 1
      %p76 = por %p74, %p75
      %p77 = scmp.ne.s32.totalorder %s69, %s72
      %p78 = scmp.eq.s32.totalorder %s12, 0
      %p79 = por %p77, %p78
      %p80 = scmp.ne.s32.totalorder %s69, %s72
      %p81 = scmp.eq.s32.totalorder %s17, 1
      %p82 = por %p80, %p81
      %p83 = scmp.ne.s32.totalorder %s72, %s73
      %p84 = scmp.eq.s32.totalorder %s17, 0
      %p85 = por %p83, %p84
      %p86 = scmp.ne.s32.totalorder %s72, %s73
      %p87 = scmp.eq.s32.totalorder %s18, 1
      %p88 = por %p86, %p87
      %p90 = scmp.ne.s32.totalorder %s73, %s89
      %p91 = scmp.eq.s32.totalorder %s18, 0
      %p92 = por %p90, %p91
      %p93 = scmp.le.s32.totalorder 1, %s12
      %p94 = scmp.lt.s32.totalorder %s12, 3
      %p95 = pnand %p93, %p94
      %p96 = pneg %p95
      // Predicated region
      $region9: #{_forward_onehot.1} parent=5 // pred_check
        _
      $region10: #{_forward_onehot.1} parent=5 // pred_check_branch
        %98 = sbr.rel (%p95) target = $region12
      $region11: #{_forward_onehot.1} parent=5 // pred_region
        %s99 = ssub.s32 %s12, 1
        // Predicated region
        $region13: #{_forward_onehot.1} parent=11 // pred_check
          %p100 = pneg %p59
        $region14: #{_forward_onehot.1} parent=11 // pred_check_branch
          %102 = sbr.rel (%p100) target = $region16
        $region15: #{_forward_onehot.1} parent=11 // pred_region
          %104 = vsyncadd [#allocation3], 0
          %s105 = sshll.u32 %s1, 4
          %s106 = int_to_ptr.hbm [resolvable:$true] %s105
          %s107 = sshll.u32 [#allocation2], 4
          %s108 = int_to_ptr.vmem [resolvable:$true] %s107
          %113 = dma.hbm_to_vmem [thread:$0]  %s106, 3072, %s108, [#allocation3], 64, 64, 4
        $region16: #{_forward_onehot.1} parent=11 // pred_fallthru
          _
      $region12: #{_forward_onehot.1} parent=5 // pred_fallthru
        _
      %p114 = scmp.lt.s32.totalorder %s12, 2
      // Predicated region
      $region17: #{_forward_onehot.1} parent=5 // pred_check
        %p115 = pneg %p114
      $region18: #{_forward_onehot.1} parent=5 // pred_check_branch
        %117 = sbr.rel (%p115) target = $region20
      $region19: #{_forward_onehot.1} parent=5 // pred_region
        // Predicated region
        $region21: #{_forward_onehot.1} parent=19 // pred_check
          %p118 = pneg %p32
        $region22: #{_forward_onehot.1} parent=19 // pred_check_branch
          %120 = sbr.rel (%p118) target = $region24
        $region23: #{_forward_onehot.1} parent=19 // pred_region
          %p121 = scmp.lt.s32.totalorder %s12, 1
          %s122 = scalar_select %p121, %s12, 1
          %s123 = smul.addr %s122, 8
          %s124 = scalar_lea.vmem %s0, %s123
        $region24: #{_forward_onehot.1} parent=19 // pred_fallthru
          _
      $region20: #{_forward_onehot.1} parent=5 // pred_fallthru
        _
      %p125 = scmp.le.s32.totalorder 1, %s12
      %p126 = scmp.lt.s32.totalorder %s12, 3
      %p127 = pnand %p125, %p126
      %p128 = pneg %p127
      // Predicated region
      $region25: #{_forward_onehot.1} parent=5 // pred_check
        _
      $region26: #{_forward_onehot.1} parent=5 // pred_check_branch
        %130 = sbr.rel (%p127) target = $region28
      $region27: #{_forward_onehot.1} parent=5 // pred_region
        %s131 = ssub.s32 %s12, 1
        // Predicated region
        $region29: #{_forward_onehot.1} parent=27 // pred_check
          %p132 = pneg %p59
        $region30: #{_forward_onehot.1} parent=27 // pred_check_branch
          %134 = sbr.rel (%p132) target = $region32
        $region31: #{_forward_onehot.1} parent=27 // pred_region
          %136 = dma.done [#allocation3], 3072
        $region32: #{_forward_onehot.1} parent=27 // pred_fallthru
          _
        %p137 = scmp.lt.s32.totalorder %s17, 1
        %s138 = scalar_select %p137, %s17, 1
        %s139 = smul.addr %s138, 8
        %s140 = scalar_lea.vmem %s0, %s139
        %p141 = pneg %p38
        %p142 = pneg %p35
        %p143 = pneg %p59
        %p144 = pneg %p56
        %p145 = pneg %p85
        %p146 = pneg %p82
        %s147 = sand.u32 %s72, 1
        %s148 = scalar_lea.sflag [#allocation4], %s147
        %s149 = sand.u32 %s72, 1
        %s150 = smul.addr %s149, 8
        %s151 = scalar_lea.vmem [#allocation5], %s150
        %p152 = scmp.lt.s32.totalorder %s17, 1
        %s153 = scalar_select %p152, %s17, 1
        %s154 = smul.addr %s153, 8
        %s155 = scalar_lea.vmem %s0, %s154
        %v156 = vld [vmem:[%s155] sm:$0xff]
        %v157 = vlaneseq
        %v158 = vand.u32 %v157, 127
        %159 = vset.pattern.permute.xlu0 0
        %160 = vperm.xlu0 %159, %v156
        %v161 = vpop.permute.xlu0 %160
        %vm162 = vcmp.eq.s32.totalorder %v161, %v158
        %v163 = vsel %vm162, 1, 0
        %v164 = vcvt.s32.f32 %v163
        %v165 = vpack.c.bf16 %v164, %v164
        %v166 = vld [vmem:[#allocation2] sm:$0xf]
        %v167 = vld [vmem:[#allocation2 + $0x4] sm:$0xf]
        %v168 = vld [vmem:[#allocation2 + $0x8] sm:$0xf]
        %v169 = vld [vmem:[#allocation2 + $0xc] sm:$0xf]
        %v170 = vld [vmem:[#allocation2 + $0x10] sm:$0xf]
        %v171 = vld [vmem:[#allocation2 + $0x14] sm:$0xf]
        %v172 = vld [vmem:[#allocation2 + $0x18] sm:$0xf]
        %v173 = vld [vmem:[#allocation2 + $0x1c] sm:$0xf]
        %v174 = vld [vmem:[#allocation2 + $0x20] sm:$0xf]
        %v175 = vld [vmem:[#allocation2 + $0x24] sm:$0xf]
        %v176 = vld [vmem:[#allocation2 + $0x28] sm:$0xf]
        %v177 = vld [vmem:[#allocation2 + $0x2c] sm:$0xf]
        %v178 = vld [vmem:[#allocation2 + $0x30] sm:$0xf]
        %v179 = vld [vmem:[#allocation2 + $0x34] sm:$0xf]
        %v180 = vld [vmem:[#allocation2 + $0x38] sm:$0xf]
        %v181 = vld [vmem:[#allocation2 + $0x3c] sm:$0xf]
        %s182 = scalar_lea.vmem [#allocation2], 64
        %v183 = vld [vmem:[%s182] sm:$0xf]
        %v184 = vld [vmem:[%s182 + $0x4] sm:$0xf]
        %v185 = vld [vmem:[%s182 + $0x8] sm:$0xf]
        %v186 = vld [vmem:[%s182 + $0xc] sm:$0xf]
        %v187 = vld [vmem:[%s182 + $0x10] sm:$0xf]
        %v188 = vld [vmem:[%s182 + $0x14] sm:$0xf]
        %v189 = vld [vmem:[%s182 + $0x18] sm:$0xf]
        %v190 = vld [vmem:[%s182 + $0x1c] sm:$0xf]
        %v191 = vld [vmem:[%s182 + $0x20] sm:$0xf]
        %v192 = vld [vmem:[%s182 + $0x24] sm:$0xf]
        %v193 = vld [vmem:[%s182 + $0x28] sm:$0xf]
        %v194 = vld [vmem:[%s182 + $0x2c] sm:$0xf]
        %v195 = vld [vmem:[%s182 + $0x30] sm:$0xf]
        %v196 = vld [vmem:[%s182 + $0x34] sm:$0xf]
        %v197 = vld [vmem:[%s182 + $0x38] sm:$0xf]
        %v198 = vld [vmem:[%s182 + $0x3c] sm:$0xf]
        %v215 = vunpack.c.l.b16 %v183
        %v216 = vunpack.c.l.b16 %v184
        %v217 = vunpack.c.l.b16 %v185
        %v218 = vunpack.c.l.b16 %v186
        %v219 = vunpack.c.l.b16 %v187
        %v220 = vunpack.c.l.b16 %v188
        %v221 = vunpack.c.l.b16 %v189
        %v222 = vunpack.c.l.b16 %v190
        %v223 = vunpack.c.l.b16 %v191
        %v224 = vunpack.c.l.b16 %v192
        %v225 = vunpack.c.l.b16 %v193
        %v226 = vunpack.c.l.b16 %v194
        %v227 = vunpack.c.l.b16 %v195
        %v228 = vunpack.c.l.b16 %v196
        %v229 = vunpack.c.l.b16 %v197
        %v230 = vunpack.c.l.b16 %v198
        %v231 = vpack.c.b16 %v216, %v215
        %v232 = vpack.c.b16 %v218, %v217
        %v233 = vpack.c.b16 %v220, %v219
        %v234 = vpack.c.b16 %v222, %v221
        %v235 = vpack.c.b16 %v224, %v223
        %v236 = vpack.c.b16 %v226, %v225
        %v237 = vpack.c.b16 %v228, %v227
        %v238 = vpack.c.b16 %v230, %v229
        %247 = vmatpush.bf16.msra.mxu0 %v238
        %248 = vmatpush.bf16.msra.mxu0 %v237
        %249 = vmatpush.bf16.msra.mxu0 %v236
        %250 = vmatpush.bf16.msra.mxu0 %v235
        %251 = vmatpush.bf16.msra.mxu0 %v234
        %252 = vmatpush.bf16.msra.mxu0 %v233
        %253 = vmatpush.bf16.msra.mxu0 %v232
        %254 = vmatpush.bf16.msra.mxu0 %v231
        %255 = vmatmul.bf16.gmra.mxu0 %v165
        %v256 = vpop.f32.mrf.mxu0
        %v257 = vadd.f32 0.0, %v256
        %v258 = vpop.f32.mrf.mxu0
        %259 = vdwg.mxu0
        %v276 = vunpack.c.l.b16 %v166
        %v277 = vunpack.c.l.b16 %v167
        %v278 = vunpack.c.l.b16 %v168
        %v279 = vunpack.c.l.b16 %v169
        %v280 = vunpack.c.l.b16 %v170
        %v281 = vunpack.c.l.b16 %v171
        %v282 = vunpack.c.l.b16 %v172
        %v283 = vunpack.c.l.b16 %v173
        %v284 = vunpack.c.l.b16 %v174
        %v285 = vunpack.c.l.b16 %v175
        %v286 = vunpack.c.l.b16 %v176
        %v287 = vunpack.c.l.b16 %v177
        %v288 = vunpack.c.l.b16 %v178
        %v289 = vunpack.c.l.b16 %v179
        %v290 = vunpack.c.l.b16 %v180
        %v291 = vunpack.c.l.b16 %v181
        %v292 = vpack.c.b16 %v277, %v276
        %v293 = vpack.c.b16 %v279, %v278
        %v294 = vpack.c.b16 %v281, %v280
        %v295 = vpack.c.b16 %v283, %v282
        %v296 = vpack.c.b16 %v285, %v284
        %v297 = vpack.c.b16 %v287, %v286
        %v298 = vpack.c.b16 %v289, %v288
        %v299 = vpack.c.b16 %v291, %v290
        %308 = vmatpush.bf16.msra.mxu0 %v299
        %309 = vmatpush.bf16.msra.mxu0 %v298
        %310 = vmatpush.bf16.msra.mxu0 %v297
        %311 = vmatpush.bf16.msra.mxu0 %v296
        %312 = vmatpush.bf16.msra.mxu0 %v295
        %313 = vmatpush.bf16.msra.mxu0 %v294
        %314 = vmatpush.bf16.msra.mxu0 %v293
        %315 = vmatpush.bf16.msra.mxu0 %v292
        %316 = vmatmul.bf16.gmra.mxu0 %v165
        %v317 = vpop.f32.mrf.mxu0
        %v318 = vadd.f32 %v257, %v317
        %v319 = vpop.f32.mrf.mxu0
        %320 = vdwg.mxu0
        %s321 = scalar_lea.vmem [#allocation2], 128
        %v322 = vld [vmem:[%s321] sm:$0xf]
        %v323 = vld [vmem:[%s321 + $0x4] sm:$0xf]
        %v324 = vld [vmem:[%s321 + $0x8] sm:$0xf]
        %v325 = vld [vmem:[%s321 + $0xc] sm:$0xf]
        %v326 = vld [vmem:[%s321 + $0x10] sm:$0xf]
        %v327 = vld [vmem:[%s321 + $0x14] sm:$0xf]
        %v328 = vld [vmem:[%s321 + $0x18] sm:$0xf]
        %v329 = vld [vmem:[%s321 + $0x1c] sm:$0xf]
        %v330 = vld [vmem:[%s321 + $0x20] sm:$0xf]
        %v331 = vld [vmem:[%s321 + $0x24] sm:$0xf]
        %v332 = vld [vmem:[%s321 + $0x28] sm:$0xf]
        %v333 = vld [vmem:[%s321 + $0x2c] sm:$0xf]
        %v334 = vld [vmem:[%s321 + $0x30] sm:$0xf]
        %v335 = vld [vmem:[%s321 + $0x34] sm:$0xf]
        %v336 = vld [vmem:[%s321 + $0x38] sm:$0xf]
        %v337 = vld [vmem:[%s321 + $0x3c] sm:$0xf]
        %v354 = vunpack.c.l.b16 %v322
        %v355 = vunpack.c.l.b16 %v323
        %v356 = vunpack.c.l.b16 %v324
        %v357 = vunpack.c.l.b16 %v325
        %v358 = vunpack.c.l.b16 %v326
        %v359 = vunpack.c.l.b16 %v327
        %v360 = vunpack.c.l.b16 %v328
        %v361 = vunpack.c.l.b16 %v329
        %v362 = vunpack.c.l.b16 %v330
        %v363 = vunpack.c.l.b16 %v331
        %v364 = vunpack.c.l.b16 %v332
        %v365 = vunpack.c.l.b16 %v333
        %v366 = vunpack.c.l.b16 %v334
        %v367 = vunpack.c.l.b16 %v335
        %v368 = vunpack.c.l.b16 %v336
        %v369 = vunpack.c.l.b16 %v337
        %v370 = vpack.c.b16 %v355, %v354
        %v371 = vpack.c.b16 %v357, %v356
        %v372 = vpack.c.b16 %v359, %v358
        %v373 = vpack.c.b16 %v361, %v360
        %v374 = vpack.c.b16 %v363, %v362
        %v375 = vpack.c.b16 %v365, %v364
        %v376 = vpack.c.b16 %v367, %v366
        %v377 = vpack.c.b16 %v369, %v368
        %386 = vmatpush.bf16.msra.mxu0 %v377
        %387 = vmatpush.bf16.msra.mxu0 %v376
        %388 = vmatpush.bf16.msra.mxu0 %v375
        %389 = vmatpush.bf16.msra.mxu0 %v374
        %390 = vmatpush.bf16.msra.mxu0 %v373
        %391 = vmatpush.bf16.msra.mxu0 %v372
        %392 = vmatpush.bf16.msra.mxu0 %v371
        %393 = vmatpush.bf16.msra.mxu0 %v370
        %394 = vmatmul.bf16.gmra.mxu0 %v165
        %v395 = vpop.f32.mrf.mxu0
        %v396 = vadd.f32 0.0, %v395
        %v397 = vpop.f32.mrf.mxu0
        %398 = vdwg.mxu0
        %v399 = vadd.f32 %v318, %v396
        %v400 = vmul.f32 %v399, %v399
        %401 = vadd.xlane.f32.xlu0 %v400
        %v402 = vpop.xlane.xlu0 %401
        %vm403 = vcmp.gt.f32.partialorder %v402, 9.0
        %v404 = vrsqrt.pop %v402
        %v405 = vmul.f32 %v404, %v402
        %v406 = vmul.f32 %v405, %v404
        %v407 = vmul.f32 0.5, %v406
        %v408 = vsub.f32 1.5, %v407
        %v409 = vmul.f32 %v404, %v408
        %vm410 = vweird.f32 %v402
        %vm411 = vweird.f32 %v404
        %vm412 = vmor %vm410, %vm411
        %v413 = vsel %vm412, %v404, %v409
        %v414 = vmul.f32 %v413, 3.0
        %v415 = vsel %vm403, %v414, 1.0
        %v416 = vmul.f32 %v399, %v415
        %417 = vst [vmem:[%s151] sm:$0xff] %v416
        %s418 = sand.u32 %s72, 1
        %s419 = scalar_lea.sflag [#allocation4], %s418
        %s420 = sand.u32 %s72, 1
        %s421 = smul.addr %s420, 8
        %s422 = scalar_lea.vmem [#allocation5], %s421
        // Predicated region
        $region33: #{_forward_onehot.1} parent=27 // pred_check
          %p423 = pneg %p82
        $region34: #{_forward_onehot.1} parent=27 // pred_check_branch
          %425 = sbr.rel (%p423) target = $region36
        $region35: #{_forward_onehot.1} parent=27 // pred_region
          %427 = vsyncadd %s419, 0
          %s428 = smul.addr %s17, 8
          %s429 = scalar_lea.hbm %s2, %s428
          %s431 = sshll.u32 %s422, 4
          %s432 = int_to_ptr.vmem [resolvable:$true] %s431
          %s433 = sshll.u32 %s429, 4
          %s434 = int_to_ptr.hbm [resolvable:$true] %s433
          %436 = dma.vmem_to_hbm [thread:$0]  %s432, 128, %s434, %s419
        $region36: #{_forward_onehot.1} parent=27 // pred_fallthru
          _
      $region28: #{_forward_onehot.1} parent=5 // pred_fallthru
        _
      %p437 = scmp.le.s32.totalorder 2, %s12
      // Predicated region
      $region37: #{_forward_onehot.1} parent=5 // pred_check
        %p438 = pneg %p437
      $region38: #{_forward_onehot.1} parent=5 // pred_check_branch
        %440 = sbr.rel (%p438) target = $region40
      $region39: #{_forward_onehot.1} parent=5 // pred_region
        %s441 = ssub.s32 %s12, 2
        // Predicated region
        $region41: #{_forward_onehot.1} parent=39 // pred_check
          %p442 = pneg %p88
        $region42: #{_forward_onehot.1} parent=39 // pred_check_branch
          %444 = sbr.rel (%p442) target = $region44
        $region43: #{_forward_onehot.1} parent=39 // pred_region
          %s445 = sand.u32 %s73, 1
          %s446 = scalar_lea.sflag [#allocation4], %s445
          %s447 = sand.u32 %s73, 1
          %s448 = smul.addr %s447, 8
          %s449 = scalar_lea.vmem [#allocation5], %s448
          %451 = dma.done %s446, 128
        $region44: #{_forward_onehot.1} parent=39 // pred_fallthru
          _
      $region40: #{_forward_onehot.1} parent=5 // pred_fallthru
        _
    $region6: #{_forward_onehot.1} parent=1 // loop_footer
      %s16 = sadd.s32 1, %s12
    $region7: #{_forward_onehot.1} parent=1 // loop_footer_branch
      %11 = sbr.rel target = $region3
    $region8: #{_forward_onehot.1} parent=1 // loop_exit
      _
    %452 = vsyncpa [#allocation3], 1
    %s453 = scalar_lea.sflag [#allocation3], 1
    %454 = vsyncpa %s453, 1
    %455 = vsyncpa [#allocation4], 1
    %s456 = scalar_lea.sflag [#allocation4], 1
    %457 = vsyncpa %s456, 1

</llo_original>
